<compile_context>
chip_gen: v7x
topology: tpu7x:2x2x1
jax: 0.10.0
libtpu: 0.0.40
codegen_flags: <defaults>
</compile_context>

<pallas_src>
import functools

import jax
import jax.numpy as jnp
from jax import lax
from jax.experimental import pallas as pl
from jax.experimental.pallas import tpu as pltpu

_LANE_W = 1024                      # lane width of the flattened slab (multiple of 128)
_VMEM_HEADROOM_BYTES = 8 << 20


def _round_up(x: int, m: int) -> int:
    return (x + m - 1) // m * m


def _chip_kind() -> str:
    try:
        return jax.devices()[0].device_kind.lower()
    except Exception:               # no TPU visible -> conservative defaults
        return ""


_CHIP_KIND = _chip_kind()
# TensorCores per chip that a "parallel" grid axis can be sharded across.
_NUM_TENSORCORES = 2 if any(t in _CHIP_KIND for t in ("v7", "v5p", "v4")) else 1
# ~4 MiB blocks on 128 MiB-VMEM parts (v5e/v6e), ~2 MiB on v7x (64 MiB VMEM).
_TARGET_BLOCK_BYTES = (2 << 20) if "v7" in _CHIP_KIND else (4 << 20)


def _sublane_multiple(dtype) -> int:
    """Second-to-last block dim must respect the dtype's sublane packing."""
    return {4: 8, 2: 16, 1: 32}.get(jnp.dtype(dtype).itemsize, 8)


# ---------------------------------------------------------------------------
# Pallas kernels
# ---------------------------------------------------------------------------
def _loss_none_kernel(x_ref, t_ref, o_ref):
    """Elementwise loss tile (reduction='none'); compute f32, store out dtype."""
    d = x_ref[...].astype(jnp.float32) - t_ref[...].astype(jnp.float32)
    o_ref[...] = (d * d).astype(o_ref.dtype)


def _loss_reduce_kernel(x_ref, t_ref, o_ref, acc_ref, *, blk_rows, inner, rows):
    """Fused elementwise loss + reduction; emits one partial sum per chunk."""
    c = pl.program_id(0)            # "parallel" chunk axis (one per TensorCore)
    i = pl.program_id(1)            # "arbitrary" streaming/reduction axis

    @pl.when(i == 0)
    def _init():
        acc_ref[...] = jnp.zeros_like(acc_ref)

    blk = c * inner + i             # logical (unclamped) block index
    valid_rows = rows - blk * blk_rows

    def _accumulate(dsq):
        # Static sublane fold kept in registers: pure full-vreg VPU adds; the
        # 8->1 sublane collapse + cross-lane reduce is deferred to _finalize.
        folded = dsq[0:8, :]
        for s in range(8, blk_rows, 8):
            folded = folded + dsq[s:s + 8, :]
        acc_ref[...] += folded

    d = x_ref[...].astype(jnp.float32) - t_ref[...].astype(jnp.float32)

    @pl.when(valid_rows >= blk_rows)            # bulk fast path: no masking
    def _bulk():
        _accumulate(d * d)

    @pl.when(valid_rows < blk_rows)             # ragged tail / clamped dup only
    def _tail():
        row = lax.broadcasted_iota(jnp.int32, (blk_rows, 1), 0)
        _accumulate(jnp.where(row < valid_rows, d * d, 0.0))

    @pl.when(i == pl.num_programs(1) - 1)
    def _finalize():
        o_ref[...] = jnp.sum(acc_ref[...]).reshape(1, 1, 1)


# ---------------------------------------------------------------------------
# Wrapper mirroring the PyTorch class structure
# ---------------------------------------------------------------------------
class CustomLossBase:
    """JAX/Pallas port of _CustomLossBase (loss + reduction fused in-kernel)."""

    def __init__(self, reduction: str = "mean"):
        assert reduction in ("none", "sum", "mean")
        self.reduction = reduction

    # --- helpers -----------------------------------------------------------
    @staticmethod
    def _to_slab(x):
        """Flatten to a lane-dense (rows, _LANE_W) slab with at most one pad."""
        flat = x.reshape(-1)
        n = flat.shape[0]
        pad = (-n) % _LANE_W
        if pad:                                 # only for ragged total sizes
            flat = jnp.pad(flat, (0, pad))      # zero-fill: pads contribute 0
        return flat.reshape(flat.shape[0] // _LANE_W, _LANE_W), n

    @staticmethod
    def _block_rows(rows, *dtypes):
        sub = max(_sublane_multiple(d) for d in dtypes)
        itemsize = max(jnp.dtype(d).itemsize for d in dtypes)
        max_rows = max(sub, (_TARGET_BLOCK_BYTES // (_LANE_W * itemsize)) // sub * sub)
        return min(max_rows, _round_up(rows, sub))

    @staticmethod
    def _vmem_limit(block_bytes, scratch_bytes=0):
        # double-buffered pipeline blocks + scratch + headroom
        return int(2 * block_bytes + scratch_bytes + _VMEM_HEADROOM_BYTES)

    # --- forward -----------------------------------------------------------
    def __call__(self, input_tensor, target_tensor):
        assert input_tensor.shape == target_tensor.shape
        orig_shape = input_tensor.shape
        x_slab, n = self._to_slab(input_tensor)
        t_slab, _ = self._to_slab(target_tensor)
        rows = x_slab.shape[0]
        blk_rows = self._block_rows(rows, input_tensor.dtype, target_tensor.dtype)
        nblocks = pl.cdiv(rows, blk_rows)
        blk_elems = blk_rows * _LANE_W
        in_block_bytes = blk_elems * (input_tensor.dtype.itemsize +
                                      target_tensor.dtype.itemsize)
        in_bytes = n * (input_tensor.dtype.itemsize + target_tensor.dtype.itemsize)

        if self.reduction == "none":
            out_dtype = input_tensor.dtype
            out = pl.pallas_call(
                _loss_none_kernel,
                out_shape=jax.ShapeDtypeStruct((rows, _LANE_W), out_dtype),
                grid_spec=pltpu.PrefetchScalarGridSpec(
                    num_scalar_prefetch=0,
                    grid=(nblocks,),
                    in_specs=[
                        pl.BlockSpec((blk_rows, _LANE_W), lambda i: (i, 0)),
                        pl.BlockSpec((blk_rows, _LANE_W), lambda i: (i, 0)),
                    ],
                    out_specs=pl.BlockSpec((blk_rows, _LANE_W), lambda i: (i, 0)),
                ),
                compiler_params=pltpu.CompilerParams(
                    dimension_semantics=("parallel",),
                    vmem_limit_bytes=self._vmem_limit(
                        in_block_bytes + blk_elems * jnp.dtype(out_dtype).itemsize),
                ),
                cost_estimate=pl.CostEstimate(
                    flops=2 * n,
                    transcendentals=0,
                    bytes_accessed=in_bytes + n * jnp.dtype(out_dtype).itemsize,
                ),
            )(x_slab, t_slab)
            flat_out = out.reshape(-1)
            if flat_out.shape[0] != n:          # undo the single lane pad
                flat_out = flat_out[:n]
            return flat_out.reshape(orig_shape)

        # ---- 'sum' / 'mean': fused reduction with per-TensorCore partial sums
        num_chunks = _NUM_TENSORCORES if nblocks >= _NUM_TENSORCORES else 1
        inner = pl.cdiv(nblocks, num_chunks)

        if num_chunks * inner > nblocks:
            # Last chunk would overshoot: clamp the DMA'd block index so it stays
            # in-bounds; the clamped duplicate block is zeroed by the gated
            # in-kernel tail mask (valid_rows <= 0).
            def in_map(c, i):
                return (jnp.minimum(c * inner + i, nblocks - 1), 0)
        else:
            def in_map(c, i):
                return (c * inner + i, 0)

        kernel = functools.partial(
            _loss_reduce_kernel, blk_rows=blk_rows, inner=inner, rows=rows)

        partials = pl.pallas_call(
            kernel,
            out_shape=jax.ShapeDtypeStruct((num_chunks, 1, 1), jnp.float32),
            grid_spec=pltpu.PrefetchScalarGridSpec(
                num_scalar_prefetch=0,
                grid=(num_chunks, inner),
                in_specs=[
                    pl.BlockSpec((blk_rows, _LANE_W), in_map),
                    pl.BlockSpec((blk_rows, _LANE_W), in_map),
                ],
                out_specs=pl.BlockSpec((1, 1, 1), lambda c, i: (c, 0, 0)),
                scratch_shapes=[pltpu.VMEM((8, _LANE_W), jnp.float32)],
            ),
            compiler_params=pltpu.CompilerParams(
                dimension_semantics=("parallel", "arbitrary"),
                vmem_limit_bytes=self._vmem_limit(
                    in_block_bytes, scratch_bytes=8 * _LANE_W * 4),
            ),
            cost_estimate=pl.CostEstimate(
                flops=3 * n,
                transcendentals=0,
                bytes_accessed=in_bytes + 4 * num_chunks,
            ),
        )(x_slab, t_slab)

        total = jnp.sum(partials)
        if self.reduction == "mean":
            total = total / jnp.float32(n)
        return total.astype(input_tensor.dtype)


class SquaredErrorLoss(CustomLossBase):
    """Concrete subclass: per-element loss = (input - target)**2 (in-kernel)."""
    pass


# ---------------------------------------------------------------------------
if __name__ == "__main__":
    key = jax.random.PRNGKey(0)
    k1, k2, k3, k4, k5, k6 = jax.random.split(key, 6)

    # --- small NCHW case: batch=2, channels=4, spatial 16x16 ---------------
    x = jax.random.normal(k1, (2, 4, 16, 16), dtype=jnp.float32)
    t = jax.random.normal(k2, (2, 4, 16, 16), dtype=jnp.float32)

    loss_mean = SquaredErrorLoss("mean")(x, t)
    loss_sum = SquaredErrorLoss("sum")(x, t)
    loss_none = SquaredErrorLoss("none")(x, t)
    jax.block_until_ready((loss_mean, loss_sum, loss_none))

    ref = (x - t) ** 2
    assert loss_none.shape == x.shape and loss_none.dtype == x.dtype
    assert jnp.allclose(loss_none, ref, atol=1e-5)
    assert jnp.allclose(loss_sum, ref.sum(), rtol=1e-5)
    assert jnp.allclose(loss_mean, ref.mean(), rtol=1e-5)

    # --- ragged case: exercises the single lane pad + gated row-tail mask --
    xr = jax.random.normal(k3, (3, 5, 7, 11), dtype=jnp.float32)
    tr = jax.random.normal(k4, (3, 5, 7, 11), dtype=jnp.float32)
    ref_r = (xr - tr) ** 2
    assert jnp.allclose(SquaredErrorLoss("none")(xr, tr), ref_r, atol=1e-5)
    assert jnp.allclose(SquaredErrorLoss("sum")(xr, tr), ref_r.sum(), rtol=1e-5)
    assert jnp.allclose(SquaredErrorLoss("mean")(xr, tr), ref_r.mean(), rtol=1e-5)

    # --- multi-block case: exercises the streaming grid (and, on multi-TC
    #     chips, the per-TensorCore chunk split with a gated tail block) ----
    xl = jax.random.normal(k5, (2056, 1024), dtype=jnp.float32)
    tl = jax.random.normal(k6, (2056, 1024), dtype=jnp.float32)
    ref_l = (xl - tl) ** 2
    big_sum = SquaredErrorLoss("sum")(xl, tl)
    big_mean = SquaredErrorLoss("mean")(xl, tl)
    jax.block_until_ready((big_sum, big_mean))
    assert jnp.allclose(big_sum, ref_l.sum(), rtol=1e-4)
    assert jnp.allclose(big_mean, ref_l.mean(), rtol=1e-4)

    print("KERNEL_OK")
</pallas_src>

<mosaic_0001>
module attributes {stable_mosaic.version = 11 : i64} {
  func.func @_loss_reduce_kernel(%arg0: i32, %arg1: i32, %arg2: memref<8x1024xf32, #tpu.memory_space<vmem>>, %arg3: memref<8x1024xf32, #tpu.memory_space<vmem>>, %arg4: memref<1x1x1xf32, #tpu.memory_space<vmem>>, %arg5: memref<8x1024xf32, #tpu.memory_space<vmem>>) attributes {dimension_semantics = [#tpu.dimension_semantics<parallel>, #tpu.dimension_semantics<arbitrary>], iteration_bounds = array<i64: 1, 1>, scalar_prefetch = 0 : i64, scratch_operands = 1 : i64, tpu.core_type = #tpu.core_type<tc>, window_params = [{transform_indices = @transform_0, window_bounds = array<i64: 8, 1024>}, {transform_indices = @transform_1, window_bounds = array<i64: 8, 1024>}, {transform_indices = @transform_2, window_bounds = array<i64: 1, 1, 1>}]} {
    %c0_i32 = arith.constant 0 : i32
    %0 = arith.cmpi eq, %arg1, %c0_i32 : i32
    %1 = arith.extui %0 : i1 to i32
    %c0_i32_0 = arith.constant 0 : i32
    %2 = arith.cmpi ne, %1, %c0_i32_0 : i32
    scf.if %2 {
      %cst = arith.constant 0.000000e+00 : f32
      %19 = vector.broadcast %cst : f32 to vector<8x1024xf32>
      %c0_10 = arith.constant 0 : index
      %c0_11 = arith.constant 0 : index
      %20 = vector.load %arg5[%c0_10, %c0_11] : memref<8x1024xf32, #tpu.memory_space<vmem>>, vector<8x1024xf32>
      tpu.vector_store %arg5[%c0_10, %c0_11], %19 {strides = array<i32>} : memref<8x1024xf32, #tpu.memory_space<vmem>>, vector<8x1024xf32>,
    } else {
    }
    %c1_i32 = arith.constant 1 : i32
    %3 = arith.muli %arg0, %c1_i32 : i32
    %4 = arith.addi %3, %arg1 : i32
    %c8_i32 = arith.constant 8 : i32
    %5 = arith.muli %4, %c8_i32 : i32
    %c2_i32 = arith.constant 2 : i32
    %6 = arith.subi %c2_i32, %5 : i32
    %c0 = arith.constant 0 : index
    %c0_1 = arith.constant 0 : index
    %7 = vector.load %arg2[%c0, %c0_1] : memref<8x1024xf32, #tpu.memory_space<vmem>>, vector<8x1024xf32>
    %c0_2 = arith.constant 0 : index
    %c0_3 = arith.constant 0 : index
    %8 = vector.load %arg3[%c0_2, %c0_3] : memref<8x1024xf32, #tpu.memory_space<vmem>>, vector<8x1024xf32>
    %9 = arith.subf %7, %8 : vector<8x1024xf32>
    %c8_i32_4 = arith.constant 8 : i32
    %10 = arith.cmpi sge, %6, %c8_i32_4 : i32
    %11 = arith.extui %10 : i1 to i32
    %c0_i32_5 = arith.constant 0 : i32
    %12 = arith.cmpi ne, %11, %c0_i32_5 : i32
    scf.if %12 {
      %19 = arith.mulf %9, %9 : vector<8x1024xf32>
      %c0_10 = arith.constant 0 : index
      %c0_11 = arith.constant 0 : index
      %20 = vector.load %arg5[%c0_10, %c0_11] : memref<8x1024xf32, #tpu.memory_space<vmem>>, vector<8x1024xf32>
      %21 = arith.addf %20, %19 : vector<8x1024xf32>
      %c0_12 = arith.constant 0 : index
      %c0_13 = arith.constant 0 : index
      %22 = vector.load %arg5[%c0_12, %c0_13] : memref<8x1024xf32, #tpu.memory_space<vmem>>, vector<8x1024xf32>
      tpu.vector_store %arg5[%c0_12, %c0_13], %21 {strides = array<i32>} : memref<8x1024xf32, #tpu.memory_space<vmem>>, vector<8x1024xf32>,
    } else {
    }
    %c8_i32_6 = arith.constant 8 : i32
    %13 = arith.cmpi slt, %6, %c8_i32_6 : i32
    %14 = arith.extui %13 : i1 to i32
    %c0_i32_7 = arith.constant 0 : i32
    %15 = arith.cmpi ne, %14, %c0_i32_7 : i32
    scf.if %15 {
      %19 = tpu.iota {dimensions = array<i32: 0>} : vector<8x1xi32>
      %20 = vector.broadcast %6 : i32 to vector<8x1xi32>
      %21 = arith.cmpi slt, %19, %20 : vector<8x1xi32>
      %22 = arith.mulf %9, %9 : vector<8x1024xf32>
      %cst = arith.constant 0.000000e+00 : f32
      %23 = vector.shape_cast %21 : vector<8x1xi1> to vector<8x1xi1>
      %24 = vector.broadcast %23 : vector<8x1xi1> to vector<8x1024xi1>
      %25 = vector.broadcast %cst : f32 to vector<8x1024xf32>
      %26 = arith.select %24, %22, %25 : vector<8x1024xi1>, vector<8x1024xf32>
      %c0_10 = arith.constant 0 : index
      %c0_11 = arith.constant 0 : index
      %27 = vector.load %arg5[%c0_10, %c0_11] : memref<8x1024xf32, #tpu.memory_space<vmem>>, vector<8x1024xf32>
      %28 = arith.addf %27, %26 : vector<8x1024xf32>
      %c0_12 = arith.constant 0 : index
      %c0_13 = arith.constant 0 : index
      %29 = vector.load %arg5[%c0_12, %c0_13] : memref<8x1024xf32, #tpu.memory_space<vmem>>, vector<8x1024xf32>
      tpu.vector_store %arg5[%c0_12, %c0_13], %28 {strides = array<i32>} : memref<8x1024xf32, #tpu.memory_space<vmem>>, vector<8x1024xf32>,
    } else {
    }
    %c0_i32_8 = arith.constant 0 : i32
    %16 = arith.cmpi eq, %arg1, %c0_i32_8 : i32
    %17 = arith.extui %16 : i1 to i32
    %c0_i32_9 = arith.constant 0 : i32
    %18 = arith.cmpi ne, %17, %c0_i32_9 : i32
    scf.if %18 {
      %c0_10 = arith.constant 0 : index
      %c0_11 = arith.constant 0 : index
      %19 = vector.load %arg5[%c0_10, %c0_11] : memref<8x1024xf32, #tpu.memory_space<vmem>>, vector<8x1024xf32>
      %20 = vector.shape_cast %19 : vector<8x1024xf32> to vector<1x8x1024xf32>
      %cst = arith.constant dense<0.000000e+00> : vector<1xf32>
      %21 = vector.multi_reduction <add>, %20, %cst [1, 2] : vector<1x8x1024xf32> to vector<1xf32>
      %22 = vector.shape_cast %21 : vector<1xf32> to vector<1x1x1xf32>
      %23 = vector.extract %22[0, 0, 0] : f32 from vector<1x1x1xf32>
      %24 = vector.broadcast %23 : f32 to vector<1x1x1xf32>
      %c0_12 = arith.constant 0 : index
      %c0_13 = arith.constant 0 : index
      %c0_14 = arith.constant 0 : index
      %25 = vector.load %arg4[%c0_12, %c0_13, %c0_14] : memref<1x1x1xf32, #tpu.memory_space<vmem>>, vector<1x1x1xf32>
      tpu.vector_store %arg4[%c0_12, %c0_13, %c0_14], %24 {strides = array<i32>} : memref<1x1x1xf32, #tpu.memory_space<vmem>>, vector<1x1x1xf32>,
    } else {
    }
    return
  }
  func.func @transform_0(%arg0: i32, %arg1: i32) -> (i32, i32) {
    %c1_i32 = arith.constant 1 : i32
    %0 = arith.muli %arg0, %c1_i32 : i32
    %1 = arith.addi %0, %arg1 : i32
    %c0_i32 = arith.constant 0 : i32
    %c0_i32_0 = arith.constant 0 : i32
    return %1, %c0_i32 : i32, i32
  }
  func.func @transform_1(%arg0: i32, %arg1: i32) -> (i32, i32) {
    %c1_i32 = arith.constant 1 : i32
    %0 = arith.muli %arg0, %c1_i32 : i32
    %1 = arith.addi %0, %arg1 : i32
    %c0_i32 = arith.constant 0 : i32
    %c0_i32_0 = arith.constant 0 : i32
    return %1, %c0_i32 : i32, i32
  }
  func.func @transform_2(%arg0: i32, %arg1: i32) -> (i32, i32, i32) {
    %c0_i32 = arith.constant 0 : i32
    %c0_i32_0 = arith.constant 0 : i32
    %c0_i32_1 = arith.constant 0 : i32
    return %arg0, %c0_i32, %c0_i32_0 : i32, i32, i32
  }
}

</mosaic_0001>

<llo_original>
// kernel: tpu_custom_call.1
$region0: #{tpu_custom_call.1}
  #allocation0 [shape = 'u32[]', space=smem, size = 0x4, offset = 0x4, fixed_abs, tag = 'smem constant byte address 0x4 - core index']
  #allocation1 [shape = 'u32[144,128]{1,0:T(1,128)}', space=vmem, size = 0x12000, scoped, tag = 'internal scratch']
  #allocation2 [shape = 'f32[8,1024]{1,0:T(8,128)}', space=vmem, size = 0x8000, scoped, tag = 'scratch operand']
  %s0 = inlined_call_operand.hbm [shape: f32[2,1024], index: 0, kind: input, shape index: {}]
  %s1 = inlined_call_operand.hbm [shape: f32[2,1024], index: 1, kind: input, shape index: {}]
  %s2 = inlined_call_operand.hbm [shape: f32[1,1,1], index: 2, kind: output, shape index: {}]
  %s3 = sld [smem:[#allocation0]]
  $region42: #{tpu_custom_call.1} parent=0
    _
  %s5 = ssub.s32 1, %s3
  %s6 = scalar_select 0, %s5, %s3
  $region1: #{tpu_custom_call.1} parent=0
    #allocation3 [shape = 'u8[32768]{0}', space=vmem, size = 0x8000, scoped, tag = 'input window, operand 0, single buffered']
    #allocation4 [shape = 's32[1]{0}', space=sflag, size = 0x4, scoped, tag = 'scoped memory for tpu_custom_call.1']
    #allocation5 [shape = 's32[1]{0}', space=sflag, size = 0x4, scoped, tag = 'scoped memory for tpu_custom_call.1']
    #allocation6 [shape = 'u8[32768]{0}', space=vmem, size = 0x8000, scoped, tag = 'input window, operand 1, single buffered']
    #allocation7 [shape = 's32[1]{0}', space=sflag, size = 0x4, scoped, tag = 'scoped memory for tpu_custom_call.1']
    #allocation8 [shape = 'u8[512]{0}', space=vmem, size = 0x400, scoped, tag = 'output window, operand 0, single buffered']
    %7 = vsyncpa [#allocation4], 0
    %8 = vsyncpa [#allocation7], 0
    %9 = vsyncpa [#allocation5], 0
    // Predicated region
    $region2: #{tpu_custom_call.1} parent=1 // pred_check
      _
    $region3: #{tpu_custom_call.1} parent=1 // pred_check_branch
      %11 = sbr.rel (0) target = $region5
    $region4: #{tpu_custom_call.1} parent=1 // pred_region
      %s12 = sadd.s32 0, 0
      %s13 = smul.u32 4, %s12
      %s14 = ssub.s32 1, %s13
      %s15 = smul.u32 32, %s14
      %s16 = smul.u32 %s15, 8
      %s18 = ssub.s32 1024, %s16
      %19 = vsyncadd [#allocation4], %s18
      %p20 = scmp.ne.s32.totalorder 0, %s16
      %s21 = smul.addr %s13, 8
      %s22 = smul.addr %s21, 32
      %s23 = scalar_lea.hbm %s0, %s22
      %s24 = smul.u32 16, %s14
      %s25 = sshll.u32 [#allocation3], 4
      %s26 = int_to_ptr.vmem [resolvable:$true] %s25
      %s27 = sshll.u32 %s24, 4
      %31 = dma.hbm_to_vmem [thread:$0]  (%p20), %s23, %s27, %s26, [#allocation4], 256, 256, 16
    $region5: #{tpu_custom_call.1} parent=1 // pred_fallthru
      _
    // Predicated region
    $region6: #{tpu_custom_call.1} parent=1 // pred_check
      _
    $region7: #{tpu_custom_call.1} parent=1 // pred_check_branch
      %33 = sbr.rel (0) target = $region9
    $region8: #{tpu_custom_call.1} parent=1 // pred_region
      %s34 = sadd.s32 0, 0
      %s35 = smul.u32 4, %s34
      %s36 = ssub.s32 1, %s35
      %s37 = smul.u32 32, %s36
      %s38 = smul.u32 %s37, 8
      %s40 = ssub.s32 1024, %s38
      %41 = vsyncadd [#allocation7], %s40
      %p42 = scmp.ne.s32.totalorder 0, %s38
      %s43 = smul.addr %s35, 8
      %s44 = smul.addr %s43, 32
      %s45 = scalar_lea.hbm %s1, %s44
      %s46 = smul.u32 16, %s36
      %s47 = sshll.u32 [#allocation6], 4
      %s48 = int_to_ptr.vmem [resolvable:$true] %s47
      %s49 = sshll.u32 %s46, 4
      %53 = dma.hbm_to_vmem [thread:$0]  (%p42), %s45, %s49, %s48, [#allocation7], 256, 256, 16
    $region9: #{tpu_custom_call.1} parent=1 // pred_fallthru
      _
    // Predicated region
    $region10: #{tpu_custom_call.1} parent=1 // pred_check
      _
    $region11: #{tpu_custom_call.1} parent=1 // pred_check_branch
      %55 = sbr.rel (0) target = $region13
    $region12: #{tpu_custom_call.1} parent=1 // pred_region
      %56 = dma.done [#allocation4], 1024
    $region13: #{tpu_custom_call.1} parent=1 // pred_fallthru
      _
    // Predicated region
    $region14: #{tpu_custom_call.1} parent=1 // pred_check
      _
    $region15: #{tpu_custom_call.1} parent=1 // pred_check_branch
      %58 = sbr.rel (0) target = $region17
    $region16: #{tpu_custom_call.1} parent=1 // pred_region
      %59 = dma.done [#allocation7], 1024
    $region17: #{tpu_custom_call.1} parent=1 // pred_fallthru
      _
    %s60 = sadd.s32 0, 0
    %s61 = smul.u32 4, %s60
    %s62 = ssub.s32 1, %s61
    %s63 = smul.u32 32, %s62
    %s64 = smul.u32 %s63, 8
    %s65 = sadd.s32 0, 0
    %s66 = smul.u32 4, %s65
    %s67 = ssub.s32 1, %s66
    %s68 = smul.u32 32, %s67
    %s69 = smul.u32 %s68, 8
    %p70 = scmp.eq.s32.totalorder 0, 0
    // Predicated region
    $region18: #{tpu_custom_call.1} parent=1 // pred_check
      %p71 = pneg %p70
    $region19: #{tpu_custom_call.1} parent=1 // pred_check_branch
      %73 = sbr.rel (%p71) target = $region21
    $region20: #{tpu_custom_call.1} parent=1 // pred_region
      %74 = vst [vmem:[#allocation2] sm:$0xff] 0.0
      %75 = vst [vmem:[#allocation2 + $0x8] sm:$0xff] 0.0
      %76 = vst [vmem:[#allocation2 + $0x10] sm:$0xff] 0.0
      %77 = vst [vmem:[#allocation2 + $0x18] sm:$0xff] 0.0
      %78 = vst [vmem:[#allocation2 + $0x20] sm:$0xff] 0.0
      %79 = vst [vmem:[#allocation2 + $0x28] sm:$0xff] 0.0
      %80 = vst [vmem:[#allocation2 + $0x30] sm:$0xff] 0.0
      %81 = vst [vmem:[#allocation2 + $0x38] sm:$0xff] 0.0
    $region21: #{tpu_custom_call.1} parent=1 // pred_fallthru
      _
    %s82 = sadd.s32 0, 0
    %s83 = smul.u32 %s82, 8
    %s84 = ssub.s32 2, %s83
    %v85 = vld [vmem:[#allocation3] sm:$0xff]
    %v86 = vld [vmem:[#allocation3 + $0x8] sm:$0xff]
    %v87 = vld [vmem:[#allocation3 + $0x10] sm:$0xff]
    %v88 = vld [vmem:[#allocation3 + $0x18] sm:$0xff]
    %v89 = vld [vmem:[#allocation3 + $0x20] sm:$0xff]
    %v90 = vld [vmem:[#allocation3 + $0x28] sm:$0xff]
    %v91 = vld [vmem:[#allocation3 + $0x30] sm:$0xff]
    %v92 = vld [vmem:[#allocation3 + $0x38] sm:$0xff]
    %v93 = vld [vmem:[#allocation6] sm:$0xff]
    %v94 = vld [vmem:[#allocation6 + $0x8] sm:$0xff]
    %v95 = vld [vmem:[#allocation6 + $0x10] sm:$0xff]
    %v96 = vld [vmem:[#allocation6 + $0x18] sm:$0xff]
    %v97 = vld [vmem:[#allocation6 + $0x20] sm:$0xff]
    %v98 = vld [vmem:[#allocation6 + $0x28] sm:$0xff]
    %v99 = vld [vmem:[#allocation6 + $0x30] sm:$0xff]
    %v100 = vld [vmem:[#allocation6 + $0x38] sm:$0xff]
    %v101 = vsub.f32 %v85, %v93
    %v102 = vsub.f32 %v86, %v94
    %v103 = vsub.f32 %v87, %v95
    %v104 = vsub.f32 %v88, %v96
    %v105 = vsub.f32 %v89, %v97
    %v106 = vsub.f32 %v90, %v98
    %v107 = vsub.f32 %v91, %v99
    %v108 = vsub.f32 %v92, %v100
    %p109 = scmp.ge.s32.totalorder %s84, 8
    // Predicated region
    $region22: #{tpu_custom_call.1} parent=1 // pred_check
      %p110 = pneg %p109
    $region23: #{tpu_custom_call.1} parent=1 // pred_check_branch
      %112 = sbr.rel (%p110) target = $region25
    $region24: #{tpu_custom_call.1} parent=1 // pred_region
      %v113 = vmul.f32 %v101, %v101
      %v114 = vmul.f32 %v102, %v102
      %v115 = vmul.f32 %v103, %v103
      %v116 = vmul.f32 %v104, %v104
      %v117 = vmul.f32 %v105, %v105
      %v118 = vmul.f32 %v106, %v106
      %v119 = vmul.f32 %v107, %v107
      %v120 = vmul.f32 %v108, %v108
      %v121 = vld [vmem:[#allocation2] sm:$0xff]
      %v122 = vld [vmem:[#allocation2 + $0x8] sm:$0xff]
      %v123 = vld [vmem:[#allocation2 + $0x10] sm:$0xff]
      %v124 = vld [vmem:[#allocation2 + $0x18] sm:$0xff]
      %v125 = vld [vmem:[#allocation2 + $0x20] sm:$0xff]
      %v126 = vld [vmem:[#allocation2 + $0x28] sm:$0xff]
      %v127 = vld [vmem:[#allocation2 + $0x30] sm:$0xff]
      %v128 = vld [vmem:[#allocation2 + $0x38] sm:$0xff]
      %v137 = vcombine.low %v113, %v115
      %v138 = vcombine.high %v113, %v115
      %v139 = vcombine.low %v117, %v119
      %v140 = vcombine.high %v117, %v119
      %v142 = vunpack.c.l.s4 1983009808
      %v143 = vunpack.c.0.s8 %v142
      %v144 = vlaneseq
      %v145 = vshrl.u32 %v144, 7
      %v146 = vsub.s32 %v143, %v145
      %v147 = vrot.slane %v137, %v146
      %v149 = vunpack.c.l.s4 1983009808
      %v150 = vunpack.c.0.s8 %v149
      %v151 = vlaneseq
      %v152 = vshrl.u32 %v151, 7
      %v153 = vsub.s32 %v150, %v152
      %v154 = vrot.slane %v138, %v153
      %v156 = vunpack.c.l.s4 1983009808
      %v157 = vunpack.c.0.s8 %v156
      %v158 = vlaneseq
      %v159 = vshrl.u32 %v158, 7
      %v160 = vsub.s32 %v157, %v159
      %v161 = vrot.slane %v139, %v160
      %v163 = vunpack.c.l.s4 1983009808
      %v164 = vunpack.c.0.s8 %v163
      %v165 = vlaneseq
      %v166 = vshrl.u32 %v165, 7
      %v167 = vsub.s32 %v164, %v166
      %v168 = vrot.slane %v140, %v167
      %v169 = vcombine.low %v147, %v161
      %v170 = vcombine.high %v147, %v161
      %v171 = vcombine.low %v154, %v168
      %v172 = vcombine.high %v154, %v168
      %v173 = vcombine.low %v114, %v116
      %v174 = vcombine.high %v114, %v116
      %v175 = vcombine.low %v118, %v120
      %v176 = vcombine.high %v118, %v120
      %v178 = vunpack.c.l.s4 1983009808
      %v179 = vunpack.c.0.s8 %v178
      %v180 = vlaneseq
      %v181 = vshrl.u32 %v180, 7
      %v182 = vsub.s32 %v179, %v181
      %v183 = vrot.slane %v173, %v182
      %v185 = vunpack.c.l.s4 1983009808
      %v186 = vunpack.c.0.s8 %v185
      %v187 = vlaneseq
      %v188 = vshrl.u32 %v187, 7
      %v189 = vsub.s32 %v186, %v188
      %v190 = vrot.slane %v174, %v189
      %v192 = vunpack.c.l.s4 1983009808
      %v193 = vunpack.c.0.s8 %v192
      %v194 = vlaneseq
      %v195 = vshrl.u32 %v194, 7
      %v196 = vsub.s32 %v193, %v195
      %v197 = vrot.slane %v175, %v196
      %v199 = vunpack.c.l.s4 1983009808
      %v200 = vunpack.c.0.s8 %v199
      %v201 = vlaneseq
      %v202 = vshrl.u32 %v201, 7
      %v203 = vsub.s32 %v200, %v202
      %v204 = vrot.slane %v176, %v203
      %v205 = vcombine.low %v183, %v197
      %v206 = vcombine.high %v183, %v197
      %v207 = vcombine.low %v190, %v204
      %v208 = vcombine.high %v190, %v204
      %v217 = vadd.f32 %v121, %v169
      %v218 = vadd.f32 %v122, %v170
      %v219 = vadd.f32 %v123, %v171
      %v220 = vadd.f32 %v124, %v172
      %v221 = vadd.f32 %v125, %v205
      %v222 = vadd.f32 %v126, %v206
      %v223 = vadd.f32 %v127, %v207
      %v224 = vadd.f32 %v128, %v208
      %225 = vst [vmem:[#allocation2] sm:$0xff] %v217
      %226 = vst [vmem:[#allocation2 + $0x8] sm:$0xff] %v218
      %227 = vst [vmem:[#allocation2 + $0x10] sm:$0xff] %v219
      %228 = vst [vmem:[#allocation2 + $0x18] sm:$0xff] %v220
      %229 = vst [vmem:[#allocation2 + $0x20] sm:$0xff] %v221
      %230 = vst [vmem:[#allocation2 + $0x28] sm:$0xff] %v222
      %231 = vst [vmem:[#allocation2 + $0x30] sm:$0xff] %v223
      %232 = vst [vmem:[#allocation2 + $0x38] sm:$0xff] %v224
    $region25: #{tpu_custom_call.1} parent=1 // pred_fallthru
      _
    %p233 = scmp.lt.s32.totalorder %s84, 8
    // Predicated region
    $region26: #{tpu_custom_call.1} parent=1 // pred_check
      %p234 = pneg %p233
    $region27: #{tpu_custom_call.1} parent=1 // pred_check_branch
      %236 = sbr.rel (%p234) target = $region29
    $region28: #{tpu_custom_call.1} parent=1 // pred_region
      %v237 = vlaneseq
      %v238 = vshrl.u32 %v237, 7
      %v239 = vstv %s84
      %vm240 = vcmp.lt.s32.totalorder %v238, %v239
      %v241 = vmul.f32 %v101, %v101
      %v242 = vmul.f32 %v102, %v102
      %v243 = vmul.f32 %v103, %v103
      %v244 = vmul.f32 %v104, %v104
      %v245 = vmul.f32 %v105, %v105
      %v246 = vmul.f32 %v106, %v106
      %v247 = vmul.f32 %v107, %v107
      %v248 = vmul.f32 %v108, %v108
      %v249 = vsel %vm240, 1, 0
      %vm250 = vcmp.eq.s32.totalorder %v249, 1
      %v259 = vcombine.low %v241, %v243
      %v260 = vcombine.high %v241, %v243
      %v261 = vcombine.low %v245, %v247
      %v262 = vcombine.high %v245, %v247
      %v264 = vunpack.c.l.s4 1983009808
      %v265 = vunpack.c.0.s8 %v264
      %v266 = vlaneseq
      %v267 = vshrl.u32 %v266, 7
      %v268 = vsub.s32 %v265, %v267
      %v269 = vrot.slane %v259, %v268
      %v271 = vunpack.c.l.s4 1983009808
      %v272 = vunpack.c.0.s8 %v271
      %v273 = vlaneseq
      %v274 = vshrl.u32 %v273, 7
      %v275 = vsub.s32 %v272, %v274
      %v276 = vrot.slane %v260, %v275
      %v278 = vunpack.c.l.s4 1983009808
      %v279 = vunpack.c.0.s8 %v278
      %v280 = vlaneseq
      %v281 = vshrl.u32 %v280, 7
      %v282 = vsub.s32 %v279, %v281
      %v283 = vrot.slane %v261, %v282
      %v285 = vunpack.c.l.s4 1983009808
      %v286 = vunpack.c.0.s8 %v285
      %v287 = vlaneseq
      %v288 = vshrl.u32 %v287, 7
      %v289 = vsub.s32 %v286, %v288
      %v290 = vrot.slane %v262, %v289
      %v291 = vcombine.low %v269, %v283
      %v292 = vcombine.high %v269, %v283
      %v293 = vcombine.low %v276, %v290
      %v294 = vcombine.high %v276, %v290
      %v295 = vcombine.low %v242, %v244
      %v296 = vcombine.high %v242, %v244
      %v297 = vcombine.low %v246, %v248
      %v298 = vcombine.high %v246, %v248
      %v300 = vunpack.c.l.s4 1983009808
      %v301 = vunpack.c.0.s8 %v300
      %v302 = vlaneseq
      %v303 = vshrl.u32 %v302, 7
      %v304 = vsub.s32 %v301, %v303
      %v305 = vrot.slane %v295, %v304
      %v307 = vunpack.c.l.s4 1983009808
      %v308 = vunpack.c.0.s8 %v307
      %v309 = vlaneseq
      %v310 = vshrl.u32 %v309, 7
      %v311 = vsub.s32 %v308, %v310
      %v312 = vrot.slane %v296, %v311
      %v314 = vunpack.c.l.s4 1983009808
      %v315 = vunpack.c.0.s8 %v314
      %v316 = vlaneseq
      %v317 = vshrl.u32 %v316, 7
      %v318 = vsub.s32 %v315, %v317
      %v319 = vrot.slane %v297, %v318
      %v321 = vunpack.c.l.s4 1983009808
      %v322 = vunpack.c.0.s8 %v321
      %v323 = vlaneseq
      %v324 = vshrl.u32 %v323, 7
      %v325 = vsub.s32 %v322, %v324
      %v326 = vrot.slane %v298, %v325
      %v327 = vcombine.low %v305, %v319
      %v328 = vcombine.high %v305, %v319
      %v329 = vcombine.low %v312, %v326
      %v330 = vcombine.high %v312, %v326
      %v339 = vsel %vm250, %v291, 0.0
      %v340 = vsel %vm250, %v292, 0.0
      %v341 = vsel %vm250, %v293, 0.0
      %v342 = vsel %vm250, %v294, 0.0
      %v343 = vsel %vm250, %v327, 0.0
      %v344 = vsel %vm250, %v328, 0.0
      %v345 = vsel %vm250, %v329, 0.0
      %v346 = vsel %vm250, %v330, 0.0
      %v347 = vld [vmem:[#allocation2] sm:$0xff]
      %v348 = vld [vmem:[#allocation2 + $0x8] sm:$0xff]
      %v349 = vld [vmem:[#allocation2 + $0x10] sm:$0xff]
      %v350 = vld [vmem:[#allocation2 + $0x18] sm:$0xff]
      %v351 = vld [vmem:[#allocation2 + $0x20] sm:$0xff]
      %v352 = vld [vmem:[#allocation2 + $0x28] sm:$0xff]
      %v353 = vld [vmem:[#allocation2 + $0x30] sm:$0xff]
      %v354 = vld [vmem:[#allocation2 + $0x38] sm:$0xff]
      %v355 = vadd.f32 %v347, %v339
      %v356 = vadd.f32 %v348, %v340
      %v357 = vadd.f32 %v349, %v341
      %v358 = vadd.f32 %v350, %v342
      %v359 = vadd.f32 %v351, %v343
      %v360 = vadd.f32 %v352, %v344
      %v361 = vadd.f32 %v353, %v345
      %v362 = vadd.f32 %v354, %v346
      %363 = vst [vmem:[#allocation2] sm:$0xff] %v355
      %364 = vst [vmem:[#allocation2 + $0x8] sm:$0xff] %v356
      %365 = vst [vmem:[#allocation2 + $0x10] sm:$0xff] %v357
      %366 = vst [vmem:[#allocation2 + $0x18] sm:$0xff] %v358
      %367 = vst [vmem:[#allocation2 + $0x20] sm:$0xff] %v359
      %368 = vst [vmem:[#allocation2 + $0x28] sm:$0xff] %v360
      %369 = vst [vmem:[#allocation2 + $0x30] sm:$0xff] %v361
      %370 = vst [vmem:[#allocation2 + $0x38] sm:$0xff] %v362
    $region29: #{tpu_custom_call.1} parent=1 // pred_fallthru
      _
    // Predicated region
    $region30: #{tpu_custom_call.1} parent=1 // pred_check
      %p371 = pneg %p70
    $region31: #{tpu_custom_call.1} parent=1 // pred_check_branch
      %373 = sbr.rel (%p371) target = $region33
    $region32: #{tpu_custom_call.1} parent=1 // pred_region
      %v374 = vld [vmem:[#allocation2] sm:$0xff]
      %v375 = vld [vmem:[#allocation2 + $0x8] sm:$0xff]
      %v376 = vld [vmem:[#allocation2 + $0x10] sm:$0xff]
      %v377 = vld [vmem:[#allocation2 + $0x18] sm:$0xff]
      %v378 = vld [vmem:[#allocation2 + $0x20] sm:$0xff]
      %v379 = vld [vmem:[#allocation2 + $0x28] sm:$0xff]
      %v380 = vld [vmem:[#allocation2 + $0x30] sm:$0xff]
      %v381 = vld [vmem:[#allocation2 + $0x38] sm:$0xff]
      %v382 = vadd.f32 %v374, %v375
      %v383 = vadd.f32 %v382, %v376
      %v384 = vadd.f32 %v383, %v377
      %v385 = vadd.f32 %v384, %v378
      %v386 = vadd.f32 %v385, %v379
      %v387 = vadd.f32 %v386, %v380
      %v388 = vadd.f32 %v387, %v381
      %389 = vadd.xlane.f32.xlu0 %v388
      %v390 = vpop.xlane.xlu0 %389
      %v391 = vrot.slane %v390, 4
      %v392 = vadd.f32 %v390, %v391
      %v393 = vrot.slane %v392, 2
      %v394 = vadd.f32 %v392, %v393
      %v395 = vrot.slane %v394, 1
      %v396 = vadd.f32 %v394, %v395
      %s397 = vtos %v396
      %v398 = vstv %s397
      %vm399 = vcmask 0
      %400 = vst.msk [vmem:[#allocation8] sm:$0x1] %vm399, %v398
    $region33: #{tpu_custom_call.1} parent=1 // pred_fallthru
      _
    // Predicated region
    $region34: #{tpu_custom_call.1} parent=1 // pred_check
      _
    $region35: #{tpu_custom_call.1} parent=1 // pred_check_branch
      %402 = sbr.rel (0) target = $region37
    $region36: #{tpu_custom_call.1} parent=1 // pred_region
      %s404 = ssub.s32 16, 16
      %405 = vsyncadd [#allocation5], %s404
      %s407 = sshll.u32 [#allocation8], 4
      %s408 = int_to_ptr.vmem [resolvable:$true] %s407
      %410 = dma.vmem_to_hbm [thread:$0]  %s408, 16, %s2, [#allocation5]
    $region37: #{tpu_custom_call.1} parent=1 // pred_fallthru
      _
    // Predicated region
    $region38: #{tpu_custom_call.1} parent=1 // pred_check
      _
    $region39: #{tpu_custom_call.1} parent=1 // pred_check_branch
      %412 = sbr.rel (0) target = $region41
    $region40: #{tpu_custom_call.1} parent=1 // pred_region
      %413 = dma.done [#allocation5], 16
    $region41: #{tpu_custom_call.1} parent=1 // pred_fallthru
      _
    %414 = vsyncpa [#allocation4], 1
    %415 = vsyncpa [#allocation7], 1
    %416 = vsyncpa [#allocation5], 1

</llo_original>
